<compile_context>
chip_gen: v6e
topology: v6e:2x2x1
jax: 0.10.0
libtpu: 0.0.40
codegen_flags: <defaults>
</compile_context>

<pallas_src>
import functools
import math

import jax
import jax.numpy as jnp
from jax.experimental import pallas as pl
from jax.experimental.pallas import tpu as pltpu


def _gelu_exact(x):
    # Exact erf-form GELU — matches PyTorch nn.GELU() default.
    return 0.5 * x * (1.0 + jax.lax.erf(x * 0.7071067811865476))


def _ghost_kernel(x_ref, w1_ref, s1_ref, b1_ref, wd_ref, s2_ref, b2_ref, o_ref,
                  *, k1, kd, seg_len, out_channels, use_act):
    """Fused primary conv + BN + GELU + depthwise conv + BN + GELU + concat.

    x_ref : (Cin, B*L)   lane-dense slab, B batch elements side by side
    w1_ref: (Ci, k1*Cin) primary-conv weight, taps folded into contraction dim
    wd_ref: (Cn, kd)     depthwise weight
    s*/b* : (C, 1)       folded eval-mode BatchNorm scale / shift
    o_ref : (out_channels, B*L)
    """
    x = x_ref[...]                                   # matmul-operand dtype
    ci = w1_ref.shape[0]
    ncols = x.shape[1]

    # Lane position inside each length-L segment; hoisted once and reused by
    # every tap mask (per tap: one roll on the XLU + one select on the VPU).
    pos = jax.lax.broadcasted_iota(jnp.int32, (1, ncols), 1) % seg_len

    def shift(v, off):
        # s[:, l] = v[:, l + off] within each length-L segment, zero outside
        # ("same" zero padding that does not leak across batch boundaries).
        if off == 0:
            return v
        rolled = pltpu.roll(v, (-off) % ncols, 1)
        valid = (pos + off >= 0) & (pos + off < seg_len)
        return jnp.where(valid, rolled, jnp.zeros_like(rolled))

    # ---- primary conv: single MXU matmul, contraction over k1*Cin ----------
    pad1 = (k1 - 1) // 2
    if k1 == 1:
        x_stack = x
    else:
        x_stack = jnp.concatenate([shift(x, k - pad1) for k in range(k1)],
                                  axis=0)
    x1 = jnp.dot(w1_ref[...], x_stack, preferred_element_type=jnp.float32)
    x1 = x1 * s1_ref[...] + b1_ref[...]              # folded BN1 (eval mode)
    if use_act:
        x1 = _gelu_exact(x1)

    # ---- cheap operation: depthwise conv = kd per-channel f32 FMAs ---------
    pad2 = (kd - 1) // 2
    wd = wd_ref[...].astype(jnp.float32)
    acc2 = wd[:, pad2:pad2 + 1] * x1                 # centre tap: no roll
    for k in range(kd):
        if k != pad2:
            acc2 = acc2 + wd[:, k:k + 1] * shift(x1, k - pad2)
    x2 = acc2 * s2_ref[...] + b2_ref[...]            # folded BN2 (eval mode)
    if use_act:
        x2 = _gelu_exact(x2)

    # ---- ghost concat + trim: direct sublane-range stores (no VMEM concat) -
    o_ref[:ci, :] = x1.astype(o_ref.dtype)
    o_ref[ci:out_channels, :] = x2[:out_channels - ci, :].astype(o_ref.dtype)


def _fold_bn(gamma, beta, mean, var, eps=1e-5):
    scale = gamma / jnp.sqrt(var + eps)
    shift = beta - mean * scale
    return scale.astype(jnp.float32), shift.astype(jnp.float32)


def _pick_batch_block(n, length, target_lanes=2048):
    """Batch elements per grid step.

    Keeps the lane axis wide (>=128 lanes when possible) while capping the
    per-step slab size.  b == n (block == full lane extent) is always legal.
    """
    if n * length <= target_lanes:
        return n
    for b in range(n, 0, -1):
        if n % b == 0 and b * length <= target_lanes and (b * length) % 128 == 0:
            return b
    return n


def ghost_module(x, params, *, out_channels, kernel_size=1, ratio=2, dw_size=3,
                 stride=1, use_act=True, mxu_dtype=None):
    """Pallas forward of GhostModule (inference / eval-mode BatchNorm)."""
    assert stride == 1, "only stride=1 implemented"
    assert ratio == 2, "only the default ratio=2 (identity depthwise grouping) implemented"
    assert kernel_size % 2 == 1 and dw_size % 2 == 1, "odd kernel sizes only"
    # TODO(synk): training-mode BatchNorm (batch statistics) has no clean fused
    # single-kernel equivalent; running-stats (eval) BN is folded instead.

    n, cin, length = x.shape
    init_channels = math.ceil(out_channels / ratio)
    new_channels = init_channels * (ratio - 1)
    if mxu_dtype is None:
        mxu_dtype = x.dtype   # pass jnp.bfloat16 here on v6e/v7x for MXU-rate matmuls

    w1 = params["w1"]                                   # (Ci, Cin, k1), PyTorch layout
    wd = params["wd"]                                   # (Cn, 1, kd)
    assert w1.shape == (init_channels, cin, kernel_size)
    assert wd.shape == (new_channels, 1, dw_size)

    s1, b1 = _fold_bn(params["bn1_gamma"], params["bn1_beta"],
                      params["bn1_mean"], params["bn1_var"])
    s2, b2 = _fold_bn(params["bn2_gamma"], params["bn2_beta"],
                      params["bn2_mean"], params["bn2_var"])

    # Kernel-friendly layouts (wrapper-side layout plumbing):
    #  * x flattened to a lane-dense (Cin, N*L) slab,
    #  * w1 taps folded into the contraction axis: (Ci, k1*Cin).
    x_flat = jnp.transpose(x, (1, 0, 2)).reshape(cin, n * length).astype(mxu_dtype)
    w1_k = jnp.transpose(w1, (0, 2, 1)).reshape(
        init_channels, kernel_size * cin).astype(mxu_dtype)
    wd_k = wd[:, 0, :].astype(jnp.float32)                    # (Cn, kd)
    s1c, b1c = s1.reshape(-1, 1), b1.reshape(-1, 1)           # (Ci, 1)
    s2c, b2c = s2.reshape(-1, 1), b2.reshape(-1, 1)           # (Cn, 1)

    b_blk = _pick_batch_block(n, length)
    bl = b_blk * length
    grid = (n // b_blk,)
    # TODO(synk): very long sequences (f32 temps approaching VMEM, esp. v7x's
    # 64 MiB) would additionally need an L-tile grid axis with (k-1)/2 halo
    # columns; not needed at these shapes.

    kernel = functools.partial(_ghost_kernel, k1=kernel_size, kd=dw_size,
                               seg_len=length, out_channels=out_channels,
                               use_act=use_act)

    out_itemsize = jnp.dtype(x.dtype).itemsize
    op_itemsize = jnp.dtype(mxu_dtype).itemsize
    # Rough per-step working set: double-buffered in/out blocks + live temps.
    live = bl * (2 * cin * op_itemsize
                 + kernel_size * cin * op_itemsize
                 + 4 * init_channels * 4
                 + 3 * new_channels * 4
                 + 2 * out_channels * out_itemsize)
    vmem_limit = int(min(64 * 2**20, max(32 * 2**20, 2 * live)))

    cost = pl.CostEstimate(
        flops=2 * n * length * (init_channels * cin * kernel_size
                                + new_channels * dw_size)
              + 8 * n * length * (init_channels + new_channels),
        transcendentals=n * length * (init_channels + new_channels),
        bytes_accessed=(x.size * op_itemsize
                        + n * out_channels * length * out_itemsize
                        + 4 * (w1_k.size + wd_k.size
                               + 2 * (init_channels + new_channels))),
    )

    in_specs = [
        pl.BlockSpec((cin, bl), lambda i: (0, i)),
        pl.BlockSpec(w1_k.shape, lambda i: (0, 0)),
        pl.BlockSpec(s1c.shape, lambda i: (0, 0)),
        pl.BlockSpec(b1c.shape, lambda i: (0, 0)),
        pl.BlockSpec(wd_k.shape, lambda i: (0, 0)),
        pl.BlockSpec(s2c.shape, lambda i: (0, 0)),
        pl.BlockSpec(b2c.shape, lambda i: (0, 0)),
    ]
    out_specs = pl.BlockSpec((out_channels, bl), lambda i: (0, i))

    out_flat = pl.pallas_call(
        kernel,
        out_shape=jax.ShapeDtypeStruct((out_channels, n * length), x.dtype),
        grid=grid,
        in_specs=in_specs,
        out_specs=out_specs,
        compiler_params=pltpu.CompilerParams(
            dimension_semantics=("parallel",),
            vmem_limit_bytes=vmem_limit),
        cost_estimate=cost,
    )(x_flat, w1_k, s1c, b1c, wd_k, s2c, b2c)

    return jnp.transpose(out_flat.reshape(out_channels, n, length), (1, 0, 2))


def ghost_ref(x, params, *, out_channels, kernel_size=1, ratio=2, dw_size=3,
              use_act=True, eps=1e-5):
    """Pure-JAX reference mirroring PyTorch GhostModule.forward (eval BN)."""
    init_channels = math.ceil(out_channels / ratio)
    w1 = params["w1"].astype(jnp.float32)
    wd = params["wd"].astype(jnp.float32)
    pad1 = (kernel_size - 1) // 2
    pad2 = (dw_size - 1) // 2
    dn = ("NCH", "OIH", "NCH")

    def bn(v, g, b, m, var):
        scale = g[None, :, None] / jnp.sqrt(var[None, :, None] + eps)
        return (v - m[None, :, None]) * scale + b[None, :, None]

    x1 = jax.lax.conv_general_dilated(x.astype(jnp.float32), w1, (1,),
                                      [(pad1, pad1)], dimension_numbers=dn)
    x1 = bn(x1, params["bn1_gamma"], params["bn1_beta"],
            params["bn1_mean"], params["bn1_var"])
    if use_act:
        x1 = _gelu_exact(x1)
    x2 = jax.lax.conv_general_dilated(x1, wd, (1,), [(pad2, pad2)],
                                      dimension_numbers=dn,
                                      feature_group_count=init_channels)
    x2 = bn(x2, params["bn2_gamma"], params["bn2_beta"],
            params["bn2_mean"], params["bn2_var"])
    if use_act:
        x2 = _gelu_exact(x2)
    out = jnp.concatenate([x1, x2], axis=1)[:, :out_channels, :]
    return out.astype(x.dtype)


if __name__ == "__main__":
    N, Cin, L = 2, 4, 128
    out_channels = 8
    kernel_size, ratio, dw_size = 1, 2, 3
    init_channels = math.ceil(out_channels / ratio)
    new_channels = init_channels * (ratio - 1)

    key = jax.random.PRNGKey(0)
    ks = jax.random.split(key, 11)
    x = jax.random.normal(ks[0], (N, Cin, L), dtype=jnp.float32)
    params = {
        "w1": jax.random.normal(ks[1], (init_channels, Cin, kernel_size), jnp.float32) * 0.5,
        "wd": jax.random.normal(ks[2], (new_channels, 1, dw_size), jnp.float32) * 0.5,
        "bn1_gamma": jax.random.uniform(ks[3], (init_channels,), jnp.float32, 0.5, 1.5),
        "bn1_beta": jax.random.normal(ks[4], (init_channels,), jnp.float32) * 0.1,
        "bn1_mean": jax.random.normal(ks[5], (init_channels,), jnp.float32) * 0.1,
        "bn1_var": jax.random.uniform(ks[6], (init_channels,), jnp.float32, 0.5, 1.5),
        "bn2_gamma": jax.random.uniform(ks[7], (new_channels,), jnp.float32, 0.5, 1.5),
        "bn2_beta": jax.random.normal(ks[8], (new_channels,), jnp.float32) * 0.1,
        "bn2_mean": jax.random.normal(ks[9], (new_channels,), jnp.float32) * 0.1,
        "bn2_var": jax.random.uniform(ks[10], (new_channels,), jnp.float32, 0.5, 1.5),
    }

    out = ghost_module(x, params, out_channels=out_channels,
                       kernel_size=kernel_size, ratio=ratio, dw_size=dw_size)
    out = jax.block_until_ready(out)

    ref = ghost_ref(x, params, out_channels=out_channels,
                    kernel_size=kernel_size, ratio=ratio, dw_size=dw_size)

    assert out.shape == (N, out_channels, L)
    assert out.dtype == x.dtype
    assert jnp.allclose(out, ref, atol=1e-4, rtol=1e-4), (
        f"max abs diff {jnp.max(jnp.abs(out - ref))}")

    print("KERNEL_OK")
</pallas_src>

<mosaic_0001>
module attributes {stable_mosaic.version = 11 : i64} {
  func.func @_ghost_kernel(%arg0: i32, %arg1: memref<4x256xf32, #tpu.memory_space<vmem>>, %arg2: memref<4x4xf32, #tpu.memory_space<vmem>>, %arg3: memref<4x1xf32, #tpu.memory_space<vmem>>, %arg4: memref<4x1xf32, #tpu.memory_space<vmem>>, %arg5: memref<4x3xf32, #tpu.memory_space<vmem>>, %arg6: memref<4x1xf32, #tpu.memory_space<vmem>>, %arg7: memref<4x1xf32, #tpu.memory_space<vmem>>, %arg8: memref<8x256xf32, #tpu.memory_space<vmem>>) attributes {dimension_semantics = [#tpu.dimension_semantics<parallel>], iteration_bounds = array<i64: 1>, scalar_prefetch = 0 : i64, scratch_operands = 0 : i64, tpu.core_type = #tpu.core_type<tc>, window_params = [{transform_indices = @transform_0, window_bounds = array<i64: 4, 256>}, {pipeline_mode = #tpu.pipeline_mode<synchronous>, transform_indices = @transform_1, window_bounds = array<i64: 4, 4>}, {pipeline_mode = #tpu.pipeline_mode<synchronous>, transform_indices = @transform_2, window_bounds = array<i64: 4, 1>}, {pipeline_mode = #tpu.pipeline_mode<synchronous>, transform_indices = @transform_3, window_bounds = array<i64: 4, 1>}, {pipeline_mode = #tpu.pipeline_mode<synchronous>, transform_indices = @transform_4, window_bounds = array<i64: 4, 3>}, {pipeline_mode = #tpu.pipeline_mode<synchronous>, transform_indices = @transform_5, window_bounds = array<i64: 4, 1>}, {pipeline_mode = #tpu.pipeline_mode<synchronous>, transform_indices = @transform_6, window_bounds = array<i64: 4, 1>}, {transform_indices = @transform_7, window_bounds = array<i64: 8, 256>}]} {
    %c0 = arith.constant 0 : index
    %c0_0 = arith.constant 0 : index
    %0 = vector.load %arg1[%c0, %c0_0] : memref<4x256xf32, #tpu.memory_space<vmem>>, vector<4x256xf32>
    %1 = tpu.iota {dimensions = array<i32: 1>} : vector<1x256xi32>
    %c128_i32 = arith.constant 128 : i32
    %c0_i32 = arith.constant 0 : i32
    %2 = arith.cmpi eq, %c128_i32, %c0_i32 : i32
    %c1_i32 = arith.constant 1 : i32
    %3 = arith.select %2, %c1_i32, %c128_i32 : i32
    %4 = vector.broadcast %3 : i32 to vector<1x256xi32>
    %5 = arith.remsi %1, %4 : vector<1x256xi32>
    %c0_i32_1 = arith.constant 0 : i32
    %6 = vector.broadcast %c0_i32_1 : i32 to vector<1x256xi32>
    %7 = arith.cmpi ne, %5, %6 : vector<1x256xi32>
    %c0_i32_2 = arith.constant 0 : i32
    %8 = vector.broadcast %c0_i32_2 : i32 to vector<1x256xi32>
    %9 = arith.cmpi slt, %5, %8 : vector<1x256xi32>
    %c0_i32_3 = arith.constant 0 : i32
    %10 = arith.cmpi slt, %3, %c0_i32_3 : i32
    %11 = vector.broadcast %10 : i1 to vector<1x256xi1>
    %12 = vector.broadcast %11 : vector<1x256xi1> to vector<1x256xi1>
    %13 = arith.xori %9, %12 : vector<1x256xi1>
    %14 = arith.andi %13, %7 : vector<1x256xi1>
    %15 = vector.broadcast %3 : i32 to vector<1x256xi32>
    %16 = arith.addi %5, %15 : vector<1x256xi32>
    %17 = arith.select %14, %16, %5 : vector<1x256xi1>, vector<1x256xi32>
    %c0_4 = arith.constant 0 : index
    %c0_5 = arith.constant 0 : index
    %18 = vector.load %arg2[%c0_4, %c0_5] : memref<4x4xf32, #tpu.memory_space<vmem>>, vector<4x4xf32>
    %cst = arith.constant dense<0.000000e+00> : vector<4x256xf32>
    %19 = tpu.matmul %18, %0, %cst {dimension_numbers = #tpu.dot_dimension_numbers<[1], [0], [0], [1], [0, 0, 1, 1], [], []>} : vector<4x4xf32>, vector<4x256xf32>, vector<4x256xf32> -> vector<4x256xf32>
    %c0_6 = arith.constant 0 : index
    %c0_7 = arith.constant 0 : index
    %20 = vector.load %arg3[%c0_6, %c0_7] : memref<4x1xf32, #tpu.memory_space<vmem>>, vector<4x1xf32>
    %21 = vector.broadcast %20 : vector<4x1xf32> to vector<4x256xf32>
    %22 = arith.mulf %19, %21 : vector<4x256xf32>
    %c0_8 = arith.constant 0 : index
    %c0_9 = arith.constant 0 : index
    %23 = vector.load %arg4[%c0_8, %c0_9] : memref<4x1xf32, #tpu.memory_space<vmem>>, vector<4x1xf32>
    %24 = vector.broadcast %23 : vector<4x1xf32> to vector<4x256xf32>
    %25 = arith.addf %22, %24 : vector<4x256xf32>
    %cst_10 = arith.constant 5.000000e-01 : f32
    %26 = vector.broadcast %cst_10 : f32 to vector<4x256xf32>
    %27 = arith.mulf %26, %25 : vector<4x256xf32>
    %cst_11 = arith.constant 0.707106769 : f32
    %28 = vector.broadcast %cst_11 : f32 to vector<4x256xf32>
    %29 = arith.mulf %25, %28 : vector<4x256xf32>
    %30 = math.erf %29 : vector<4x256xf32>
    %cst_12 = arith.constant 1.000000e+00 : f32
    %31 = vector.broadcast %cst_12 : f32 to vector<4x256xf32>
    %32 = arith.addf %31, %30 : vector<4x256xf32>
    %33 = arith.mulf %27, %32 : vector<4x256xf32>
    %c0_13 = arith.constant 0 : index
    %c0_14 = arith.constant 0 : index
    %34 = vector.load %arg5[%c0_13, %c0_14] : memref<4x3xf32, #tpu.memory_space<vmem>>, vector<4x3xf32>
    %35 = vector.extract_strided_slice %34 {offsets = [0, 1], sizes = [4, 1], strides = [1, 1]} : vector<4x3xf32> to vector<4x1xf32>
    %36 = vector.broadcast %35 : vector<4x1xf32> to vector<4x256xf32>
    %37 = arith.mulf %36, %33 : vector<4x256xf32>
    %38 = vector.extract_strided_slice %34 {offsets = [0, 0], sizes = [4, 1], strides = [1, 1]} : vector<4x3xf32> to vector<4x1xf32>
    %c1_i32_15 = arith.constant 1 : i32
    %39 = tpu.dynamic_rotate %33 by %c1_i32_15 dim 1 : vector<4x256xf32>, i32 -> vector<4x256xf32>
    %c-1_i32 = arith.constant -1 : i32
    %40 = vector.broadcast %c-1_i32 : i32 to vector<1x256xi32>
    %41 = arith.addi %17, %40 : vector<1x256xi32>
    %c0_i32_16 = arith.constant 0 : i32
    %42 = vector.broadcast %c0_i32_16 : i32 to vector<1x256xi32>
    %43 = arith.cmpi sge, %41, %42 : vector<1x256xi32>
    %c-1_i32_17 = arith.constant -1 : i32
    %44 = vector.broadcast %c-1_i32_17 : i32 to vector<1x256xi32>
    %45 = arith.addi %17, %44 : vector<1x256xi32>
    %c128_i32_18 = arith.constant 128 : i32
    %46 = vector.broadcast %c128_i32_18 : i32 to vector<1x256xi32>
    %47 = arith.cmpi slt, %45, %46 : vector<1x256xi32>
    %48 = arith.andi %43, %47 : vector<1x256xi1>
    %cst_19 = arith.constant 0.000000e+00 : f32
    %49 = vector.broadcast %cst_19 : f32 to vector<4x256xf32>
    %50 = vector.shape_cast %48 : vector<1x256xi1> to vector<1x256xi1>
    %51 = vector.broadcast %50 : vector<1x256xi1> to vector<4x256xi1>
    %52 = arith.select %51, %39, %49 : vector<4x256xi1>, vector<4x256xf32>
    %53 = vector.broadcast %38 : vector<4x1xf32> to vector<4x256xf32>
    %54 = arith.mulf %53, %52 : vector<4x256xf32>
    %55 = arith.addf %37, %54 : vector<4x256xf32>
    %56 = vector.extract_strided_slice %34 {offsets = [0, 2], sizes = [4, 1], strides = [1, 1]} : vector<4x3xf32> to vector<4x1xf32>
    %c255_i32 = arith.constant 255 : i32
    %57 = tpu.dynamic_rotate %33 by %c255_i32 dim 1 : vector<4x256xf32>, i32 -> vector<4x256xf32>
    %c1_i32_20 = arith.constant 1 : i32
    %58 = vector.broadcast %c1_i32_20 : i32 to vector<1x256xi32>
    %59 = arith.addi %17, %58 : vector<1x256xi32>
    %c0_i32_21 = arith.constant 0 : i32
    %60 = vector.broadcast %c0_i32_21 : i32 to vector<1x256xi32>
    %61 = arith.cmpi sge, %59, %60 : vector<1x256xi32>
    %c1_i32_22 = arith.constant 1 : i32
    %62 = vector.broadcast %c1_i32_22 : i32 to vector<1x256xi32>
    %63 = arith.addi %17, %62 : vector<1x256xi32>
    %c128_i32_23 = arith.constant 128 : i32
    %64 = vector.broadcast %c128_i32_23 : i32 to vector<1x256xi32>
    %65 = arith.cmpi slt, %63, %64 : vector<1x256xi32>
    %66 = arith.andi %61, %65 : vector<1x256xi1>
    %cst_24 = arith.constant 0.000000e+00 : f32
    %67 = vector.broadcast %cst_24 : f32 to vector<4x256xf32>
    %68 = vector.shape_cast %66 : vector<1x256xi1> to vector<1x256xi1>
    %69 = vector.broadcast %68 : vector<1x256xi1> to vector<4x256xi1>
    %70 = arith.select %69, %57, %67 : vector<4x256xi1>, vector<4x256xf32>
    %71 = vector.broadcast %56 : vector<4x1xf32> to vector<4x256xf32>
    %72 = arith.mulf %71, %70 : vector<4x256xf32>
    %73 = arith.addf %55, %72 : vector<4x256xf32>
    %c0_25 = arith.constant 0 : index
    %c0_26 = arith.constant 0 : index
    %74 = vector.load %arg6[%c0_25, %c0_26] : memref<4x1xf32, #tpu.memory_space<vmem>>, vector<4x1xf32>
    %75 = vector.broadcast %74 : vector<4x1xf32> to vector<4x256xf32>
    %76 = arith.mulf %73, %75 : vector<4x256xf32>
    %c0_27 = arith.constant 0 : index
    %c0_28 = arith.constant 0 : index
    %77 = vector.load %arg7[%c0_27, %c0_28] : memref<4x1xf32, #tpu.memory_space<vmem>>, vector<4x1xf32>
    %78 = vector.broadcast %77 : vector<4x1xf32> to vector<4x256xf32>
    %79 = arith.addf %76, %78 : vector<4x256xf32>
    %cst_29 = arith.constant 5.000000e-01 : f32
    %80 = vector.broadcast %cst_29 : f32 to vector<4x256xf32>
    %81 = arith.mulf %80, %79 : vector<4x256xf32>
    %cst_30 = arith.constant 0.707106769 : f32
    %82 = vector.broadcast %cst_30 : f32 to vector<4x256xf32>
    %83 = arith.mulf %79, %82 : vector<4x256xf32>
    %84 = math.erf %83 : vector<4x256xf32>
    %cst_31 = arith.constant 1.000000e+00 : f32
    %85 = vector.broadcast %cst_31 : f32 to vector<4x256xf32>
    %86 = arith.addf %85, %84 : vector<4x256xf32>
    %87 = arith.mulf %81, %86 : vector<4x256xf32>
    %c0_32 = arith.constant 0 : index
    %c0_33 = arith.constant 0 : index
    %88 = vector.load %arg8[%c0_32, %c0_33] : memref<8x256xf32, #tpu.memory_space<vmem>>, vector<4x256xf32>
    tpu.vector_store %arg8[%c0_32, %c0_33], %33 {strides = array<i32>} : memref<8x256xf32, #tpu.memory_space<vmem>>, vector<4x256xf32>,
    %c4 = arith.constant 4 : index
    %c0_34 = arith.constant 0 : index
    %89 = vector.load %arg8[%c4, %c0_34] : memref<8x256xf32, #tpu.memory_space<vmem>>, vector<4x256xf32>
    tpu.vector_store %arg8[%c4, %c0_34], %87 {strides = array<i32>} : memref<8x256xf32, #tpu.memory_space<vmem>>, vector<4x256xf32>,
    return
  }
  func.func @transform_0(%arg0: i32) -> (i32, i32) {
    %c0_i32 = arith.constant 0 : i32
    %c0_i32_0 = arith.constant 0 : i32
    return %c0_i32, %arg0 : i32, i32
  }
  func.func @transform_1(%arg0: i32) -> (i32, i32) {
    %c0_i32 = arith.constant 0 : i32
    %c0_i32_0 = arith.constant 0 : i32
    %c0_i32_1 = arith.constant 0 : i32
    return %c0_i32, %c0_i32_0 : i32, i32
  }
  func.func @transform_2(%arg0: i32) -> (i32, i32) {
    %c0_i32 = arith.constant 0 : i32
    %c0_i32_0 = arith.constant 0 : i32
    %c0_i32_1 = arith.constant 0 : i32
    return %c0_i32, %c0_i32_0 : i32, i32
  }
  func.func @transform_3(%arg0: i32) -> (i32, i32) {
    %c0_i32 = arith.constant 0 : i32
    %c0_i32_0 = arith.constant 0 : i32
    %c0_i32_1 = arith.constant 0 : i32
    return %c0_i32, %c0_i32_0 : i32, i32
  }
  func.func @transform_4(%arg0: i32) -> (i32, i32) {
    %c0_i32 = arith.constant 0 : i32
    %c0_i32_0 = arith.constant 0 : i32
    %c0_i32_1 = arith.constant 0 : i32
    return %c0_i32, %c0_i32_0 : i32, i32
  }
  func.func @transform_5(%arg0: i32) -> (i32, i32) {
    %c0_i32 = arith.constant 0 : i32
    %c0_i32_0 = arith.constant 0 : i32
    %c0_i32_1 = arith.constant 0 : i32
    return %c0_i32, %c0_i32_0 : i32, i32
  }
  func.func @transform_6(%arg0: i32) -> (i32, i32) {
    %c0_i32 = arith.constant 0 : i32
    %c0_i32_0 = arith.constant 0 : i32
    %c0_i32_1 = arith.constant 0 : i32
    return %c0_i32, %c0_i32_0 : i32, i32
  }
  func.func @transform_7(%arg0: i32) -> (i32, i32) {
    %c0_i32 = arith.constant 0 : i32
    %c0_i32_0 = arith.constant 0 : i32
    return %c0_i32, %arg0 : i32, i32
  }
}

</mosaic_0001>

<llo_original>
// kernel: tpu_custom_call.1
$region0: #{tpu_custom_call.1}
  #allocation0 [shape = 'u32[]', space=smem, size = 0x4, offset = 0x4, fixed_abs, tag = 'smem constant byte address 0x4 - core index']
  #allocation1 [shape = 'u32[144,128]{1,0:T(1,128)}', space=vmem, size = 0x12000, scoped, tag = 'internal scratch']
  %s0 = inlined_call_operand.vmem [shape: f32[4,256], index: 0, kind: input, shape index: {}]
  %s1 = inlined_call_operand.vmem [shape: f32[4,4], index: 1, kind: input, shape index: {}]
  %s2 = inlined_call_operand.vmem [shape: f32[4,1], index: 2, kind: input, shape index: {}]
  %s3 = inlined_call_operand.vmem [shape: f32[4,1], index: 3, kind: input, shape index: {}]
  %s4 = inlined_call_operand.vmem [shape: f32[4,3], index: 4, kind: input, shape index: {}]
  %s5 = inlined_call_operand.vmem [shape: f32[4,1], index: 5, kind: input, shape index: {}]
  %s6 = inlined_call_operand.vmem [shape: f32[4,1], index: 6, kind: input, shape index: {}]
  %s7 = inlined_call_operand.hbm [shape: f32[8,256], index: 7, kind: output, shape index: {}]
  %s8 = sld [smem:[#allocation0]]
  $region38: #{tpu_custom_call.1} parent=0
    _
  %s10 = ssub.s32 1, %s8
  %s11 = scalar_select 0, %s10, %s8
  $region1: #{tpu_custom_call.1} parent=0
    #allocation2 [shape = 'u8[8192]{0}', space=vmem, size = 0x2000, scoped, tag = 'output window, operand 0, single buffered']
    #allocation3 [shape = 's32[1]{0}', space=sflag, size = 0x4, scoped, tag = 'scoped memory for tpu_custom_call.1']
    %12 = vsyncpa [#allocation3], 0
    // Predicated region
    $region2: #{tpu_custom_call.1} parent=1 // pred_check
      _
    $region3: #{tpu_custom_call.1} parent=1 // pred_check_branch
      %14 = sbr.rel (0) target = $region5
    $region4: #{tpu_custom_call.1} parent=1 // pred_region
      _
    $region5: #{tpu_custom_call.1} parent=1 // pred_fallthru
      _
    // Predicated region
    $region6: #{tpu_custom_call.1} parent=1 // pred_check
      _
    $region7: #{tpu_custom_call.1} parent=1 // pred_check_branch
      %16 = sbr.rel (0) target = $region9
    $region8: #{tpu_custom_call.1} parent=1 // pred_region
      _
    $region9: #{tpu_custom_call.1} parent=1 // pred_fallthru
      _
    // Predicated region
    $region10: #{tpu_custom_call.1} parent=1 // pred_check
      _
    $region11: #{tpu_custom_call.1} parent=1 // pred_check_branch
      %18 = sbr.rel (0) target = $region13
    $region12: #{tpu_custom_call.1} parent=1 // pred_region
      _
    $region13: #{tpu_custom_call.1} parent=1 // pred_fallthru
      _
    // Predicated region
    $region14: #{tpu_custom_call.1} parent=1 // pred_check
      _
    $region15: #{tpu_custom_call.1} parent=1 // pred_check_branch
      %20 = sbr.rel (0) target = $region17
    $region16: #{tpu_custom_call.1} parent=1 // pred_region
      _
    $region17: #{tpu_custom_call.1} parent=1 // pred_fallthru
      _
    // Predicated region
    $region18: #{tpu_custom_call.1} parent=1 // pred_check
      _
    $region19: #{tpu_custom_call.1} parent=1 // pred_check_branch
      %22 = sbr.rel (0) target = $region21
    $region20: #{tpu_custom_call.1} parent=1 // pred_region
      _
    $region21: #{tpu_custom_call.1} parent=1 // pred_fallthru
      _
    // Predicated region
    $region22: #{tpu_custom_call.1} parent=1 // pred_check
      _
    $region23: #{tpu_custom_call.1} parent=1 // pred_check_branch
      %24 = sbr.rel (0) target = $region25
    $region24: #{tpu_custom_call.1} parent=1 // pred_region
      _
    $region25: #{tpu_custom_call.1} parent=1 // pred_fallthru
      _
    // Predicated region
    $region26: #{tpu_custom_call.1} parent=1 // pred_check
      _
    $region27: #{tpu_custom_call.1} parent=1 // pred_check_branch
      %26 = sbr.rel (0) target = $region29
    $region28: #{tpu_custom_call.1} parent=1 // pred_region
      _
    $region29: #{tpu_custom_call.1} parent=1 // pred_fallthru
      _
    %v27 = vld [vmem:[%s0] sm:$0xff]
    %v28 = vlaneseq
    %v29 = vand.u32 %v28, 127
    %v30 = vadd.s32 %v29, 128
    %vm31 = vcmp.lt.s32.totalorder %v29, 0
    %v32 = vsub.s32 0, %v29
    %v33 = vsel %vm31, %v32, %v29
    %v34 = vshrl.u32 %v33, 7
    %v35 = vand.u32 %v33, 127
    %v36 = vsub.s32 0, %v35
    %v37 = vsel %vm31, %v36, %v35
    %vm38 = vcmp.lt.s32.totalorder %v30, 0
    %v39 = vsub.s32 0, %v30
    %v40 = vsel %vm38, %v39, %v30
    %v41 = vshrl.u32 %v40, 7
    %v42 = vand.u32 %v40, 127
    %v43 = vsub.s32 0, %v42
    %v44 = vsel %vm38, %v43, %v42
    %vm45 = vcmp.ne.s32.totalorder %v37, 0
    %vm46 = vcmp.ne.s32.totalorder %v44, 0
    %vm47 = vcmp.lt.s32.totalorder %v37, 0
    %vm48 = vcmp.lt.s32.totalorder %v44, 0
    %vm49 = vmand %vm47, %vm45
    %vm50 = vmand %vm48, %vm46
    %v51 = vadd.s32 %v37, 128
    %v52 = vadd.s32 %v44, 128
    %v53 = vsel %vm49, %v51, %v37
    %v54 = vsel %vm50, %v52, %v44
    %v55 = vld [vmem:[%s1] sm:$0xf]
    %v57 = vcombine.high %v27, %v27
    %vm58 = vcmask 31744
    %v60 = vsel %vm58, %v55, 0
    %vm62 = vcmask 1043456
    %v63 = vsel %vm62, %v27, 0
    %v65 = vsel %vm62, %v57, 0
    %67 = vmatprep.subr.mxu0 0.0
    %68 = vmatpush1.msra.mxu0 0.0
    %69 = vmatprep.subr.mxu0 0.0
    %70 = vmatpush1.msra.mxu0 0.0
    %71 = vmatprep.subr.mxu0 0.0
    %72 = vmatpush1.msra.mxu0 0.0
    %73 = vmatprep.subr.mxu0 0.0
    %74 = vmatpush1.msra.mxu0 0.0
    %75 = vmatprep.subr.mxu0 0.0
    %76 = vmatpush1.msra.mxu0 0.0
    %77 = vmatprep.subr.mxu0 0.0
    %78 = vmatpush1.msra.mxu0 0.0
    %79 = vmatprep.subr.mxu0 0.0
    %80 = vmatpush1.msra.mxu0 0.0
    %81 = vmatprep.subr.mxu0 0.0
    %82 = vmatpush1.msra.mxu0 0.0
    %83 = vmatprep.subr.mxu0 0.0
    %84 = vmatpush1.msra.mxu0 0.0
    %85 = vmatprep.subr.mxu0 0.0
    %86 = vmatpush1.msra.mxu0 0.0
    %87 = vmatprep.subr.mxu0 0.0
    %88 = vmatpush1.msra.mxu0 0.0
    %89 = vmatprep.subr.mxu0 0.0
    %90 = vmatpush1.msra.mxu0 0.0
    %91 = vmatprep.subr.mxu0 0.0
    %92 = vmatpush1.msra.mxu0 0.0
    %93 = vmatprep.subr.mxu0 0.0
    %94 = vmatpush1.msra.mxu0 0.0
    %95 = vmatprep.subr.mxu0 0.0
    %96 = vmatpush1.msra.mxu0 0.0
    %97 = vmatprep.subr.mxu0 %v65
    %98 = vmatpush1.msra.mxu0 %v63
    %99 = vmatprep.subr.mxu0 0.0
    %100 = vmatpush2.msra.mxu0 0.0
    %101 = vmatprep.subr.mxu0 0.0
    %102 = vmatpush2.msra.mxu0 0.0
    %103 = vmatprep.subr.mxu0 0.0
    %104 = vmatpush2.msra.mxu0 0.0
    %105 = vmatprep.subr.mxu0 0.0
    %106 = vmatpush2.msra.mxu0 0.0
    %107 = vmatprep.subr.mxu0 0.0
    %108 = vmatpush2.msra.mxu0 0.0
    %109 = vmatprep.subr.mxu0 0.0
    %110 = vmatpush2.msra.mxu0 0.0
    %111 = vmatprep.subr.mxu0 0.0
    %112 = vmatpush2.msra.mxu0 0.0
    %113 = vmatprep.subr.mxu0 0.0
    %114 = vmatpush2.msra.mxu0 0.0
    %115 = vmatprep.subr.mxu0 0.0
    %116 = vmatpush2.msra.mxu0 0.0
    %117 = vmatprep.subr.mxu0 0.0
    %118 = vmatpush2.msra.mxu0 0.0
    %119 = vmatprep.subr.mxu0 0.0
    %120 = vmatpush2.msra.mxu0 0.0
    %121 = vmatprep.subr.mxu0 0.0
    %122 = vmatpush2.msra.mxu0 0.0
    %123 = vmatprep.subr.mxu0 0.0
    %124 = vmatpush2.msra.mxu0 0.0
    %125 = vmatprep.subr.mxu0 0.0
    %126 = vmatpush2.msra.mxu0 0.0
    %127 = vmatprep.subr.mxu0 0.0
    %128 = vmatpush2.msra.mxu0 0.0
    %129 = vmatprep.subr.mxu0 0.0
    %130 = vmatpush2.msra.mxu0 0.0
    %131 = vmatprep.mubr.f32.mxu0 0.0
    %132 = vmatmul.mubr.f32.gmra.mxu0 %v60
    %v133 = vpop.f32.mrf.mxu0
    %v134 = vadd.f32 0.0, %v133
    %v135 = vpop.f32.mrf.mxu0
    %v136 = vadd.f32 0.0, %v135
    %137 = vdwg.mxu0
    %v138 = vld [vmem:[%s2] sm:$0xf]
    %140 = vset.pattern.permute.xlu0 0
    %141 = vperm.xlu0 %140, %v138
    %v142 = vpop.permute.xlu0 %141
    %v144 = vmul.f32 %v134, %v142
    %v145 = vmul.f32 %v136, %v142
    %v146 = vld [vmem:[%s3] sm:$0xf]
    %148 = vset.pattern.permute.xlu0 0
    %149 = vperm.xlu0 %148, %v146
    %v150 = vpop.permute.xlu0 %149
    %v152 = vadd.f32 %v144, %v150
    %v153 = vadd.f32 %v145, %v150
    %v154 = vmul.f32 %v152, 0.5
    %v155 = vmul.f32 %v153, 0.5
    %v156 = vmul.f32 %v152, 0.70710677
    %v157 = vmul.f32 %v153, 0.70710677
    %v158 = verf.f32.pop %v156
    %v159 = verf.f32.pop %v157
    %v160 = vadd.f32 %v158, 1.0
    %v161 = vadd.f32 %v159, 1.0
    %v162 = vmul.f32 %v154, %v160
    %v163 = vmul.f32 %v155, %v161
    %v164 = vld [vmem:[%s4] sm:$0xf]
    %166 = vset.pattern.permute.xlu0 1
    %167 = vperm.xlu0 %166, %v164
    %v168 = vpop.permute.xlu0 %167
    %v170 = vmul.f32 %v168, %v162
    %v171 = vmul.f32 %v168, %v163
    %172 = vrot.lane.b32.xlu0 %v162, 1
    %v173 = vpop.permute.xlu0 %172
    %174 = vrot.lane.b32.xlu0 %v163, 1
    %v175 = vpop.permute.xlu0 %174
    %vm176 = vcmp.lt.s32.totalorder %v29, 1
    %v177 = vsel %vm176, %v173, %v175
    %v178 = vsel %vm176, %v175, %v173
    %v179 = vadd.s32 %v53, 4294967295
    %v180 = vadd.s32 %v54, 4294967295
    %vm181 = vcmp.ge.s32.totalorder %v179, 0
    %vm182 = vcmp.ge.s32.totalorder %v180, 0
    %vm183 = vcmp.lt.s32.totalorder %v179, 128
    %vm184 = vcmp.lt.s32.totalorder %v180, 128
    %vm185 = vmand %vm181, %vm183
    %vm186 = vmand %vm182, %vm184
    %v187 = vsel %vm185, 1, 0
    %v188 = vsel %vm186, 1, 0
    %vm189 = vcmp.eq.s32.totalorder %v187, 1
    %vm190 = vcmp.eq.s32.totalorder %v188, 1
    %v191 = vsel %vm189, %v178, 0.0
    %v192 = vsel %vm190, %v177, 0.0
    %193 = vset.pattern.permute.xlu0 0
    %194 = vperm.xlu0 %193, %v164
    %v195 = vpop.permute.xlu0 %194
    %v197 = vmul.f32 %v195, %v191
    %v198 = vmul.f32 %v195, %v192
    %v199 = vadd.f32 %v170, %v197
    %v200 = vadd.f32 %v171, %v198
    %201 = vrot.lane.b32.xlu0 %v162, 127
    %v202 = vpop.permute.xlu0 %201
    %203 = vrot.lane.b32.xlu0 %v163, 127
    %v204 = vpop.permute.xlu0 %203
    %vm205 = vcmp.lt.s32.totalorder %v29, 127
    %v206 = vsel %vm205, %v202, %v204
    %v207 = vsel %vm205, %v204, %v202
    %v208 = vadd.s32 %v53, 1
    %v209 = vadd.s32 %v54, 1
    %vm210 = vcmp.ge.s32.totalorder %v208, 0
    %vm211 = vcmp.ge.s32.totalorder %v209, 0
    %vm212 = vcmp.lt.s32.totalorder %v208, 128
    %vm213 = vcmp.lt.s32.totalorder %v209, 128
    %vm214 = vmand %vm210, %vm212
    %vm215 = vmand %vm211, %vm213
    %v216 = vsel %vm214, 1, 0
    %v217 = vsel %vm215, 1, 0
    %vm218 = vcmp.eq.s32.totalorder %v216, 1
    %vm219 = vcmp.eq.s32.totalorder %v217, 1
    %v220 = vsel %vm218, %v206, 0.0
    %v221 = vsel %vm219, %v207, 0.0
    %222 = vset.pattern.permute.xlu0 2
    %223 = vperm.xlu0 %222, %v164
    %v224 = vpop.permute.xlu0 %223
    %v226 = vmul.f32 %v224, %v220
    %v227 = vmul.f32 %v224, %v221
    %v228 = vadd.f32 %v199, %v226
    %v229 = vadd.f32 %v200, %v227
    %v230 = vld [vmem:[%s5] sm:$0xf]
    %232 = vset.pattern.permute.xlu0 0
    %233 = vperm.xlu0 %232, %v230
    %v234 = vpop.permute.xlu0 %233
    %v236 = vmul.f32 %v228, %v234
    %v237 = vmul.f32 %v229, %v234
    %v238 = vld [vmem:[%s6] sm:$0xf]
    %240 = vset.pattern.permute.xlu0 0
    %241 = vperm.xlu0 %240, %v238
    %v242 = vpop.permute.xlu0 %241
    %v244 = vadd.f32 %v236, %v242
    %v245 = vadd.f32 %v237, %v242
    %v246 = vmul.f32 %v244, 0.5
    %v247 = vmul.f32 %v245, 0.5
    %v248 = vmul.f32 %v244, 0.70710677
    %v249 = vmul.f32 %v245, 0.70710677
    %v250 = verf.f32.pop %v248
    %v251 = verf.f32.pop %v249
    %v252 = vadd.f32 %v250, 1.0
    %v253 = vadd.f32 %v251, 1.0
    %v254 = vmul.f32 %v246, %v252
    %v255 = vmul.f32 %v247, %v253
    %256 = vst [vmem:[#allocation2] sm:$0xf] %v162
    %257 = vst [vmem:[#allocation2 + $0x8] sm:$0xf] %v163
    %v260 = vrot.slane %v254, 4
    %v261 = vrot.slane %v255, 4
    %264 = vst [vmem:[#allocation2] sm:$0xf0] %v260
    %265 = vst [vmem:[#allocation2 + $0x8] sm:$0xf0] %v261
    // Predicated region
    $region30: #{tpu_custom_call.1} parent=1 // pred_check
      _
    $region31: #{tpu_custom_call.1} parent=1 // pred_check_branch
      %267 = sbr.rel (0) target = $region33
    $region32: #{tpu_custom_call.1} parent=1 // pred_region
      %s269 = ssub.s32 256, 256
      %270 = vsyncadd [#allocation3], %s269
      %s272 = sshll.u32 [#allocation2], 4
      %s273 = int_to_ptr.vmem [resolvable:$true] %s272
      %275 = dma.vmem_to_hbm [thread:$0]  %s273, 256, %s7, [#allocation3]
    $region33: #{tpu_custom_call.1} parent=1 // pred_fallthru
      _
    // Predicated region
    $region34: #{tpu_custom_call.1} parent=1 // pred_check
      _
    $region35: #{tpu_custom_call.1} parent=1 // pred_check_branch
      %277 = sbr.rel (0) target = $region37
    $region36: #{tpu_custom_call.1} parent=1 // pred_region
      %278 = dma.done [#allocation3], 256
    $region37: #{tpu_custom_call.1} parent=1 // pred_fallthru
      _
    %279 = vsyncpa [#allocation3], 1

</llo_original>
